<compile_context>
chip_gen: v5e
topology: v5e:2x2
jax: 0.10.0
libtpu: 0.0.40
codegen_flags: <defaults>
</compile_context>

<pallas_src>
import jax
import jax.numpy as jnp
from jax.experimental import pallas as pl
from jax.experimental.pallas import tpu as pltpu

LANES = 128
SUBLANES = 8
ACC_ROWS_WIDE = 32                     # wider accumulator (4 independent streams)
TILE_BYTES_TARGET = 4 * 1024 * 1024    # ~4 MiB / input / buffer (v7x-safe)
VMEM_LIMIT_BYTES = 48 * 1024 * 1024    # <= 64 MiB physical on v7x


def _core_split():
    """(num_splits, use_core_parallel) for the current chip."""
    try:
        kind = jax.devices()[0].device_kind.lower()
    except Exception:  # pragma: no cover - defensive
        return 1, False
    if "v7" in kind:
        return 2, True          # 2 TensorCores/chip; needs CORE_PARALLEL to shard
    if "v4" in kind or "v5p" in kind:
        return 2, False         # megacore: plain "parallel" shards across cores
    return 1, False             # v5e / v6e: single TensorCore


def _tile_rows_for(dtype, rows_main):
    itemsize = jnp.dtype(dtype).itemsize
    rows = TILE_BYTES_TARGET // (LANES * itemsize)
    rows = max(SUBLANES, (rows // SUBLANES) * SUBLANES)
    return min(rows, rows_main)


def _make_ssd_kernel(rows_valid, tile_rows, tiles_per_split, acc_rows,
                     needs_mask, first_masked_tile):
    """Accumulates the sum of squared differences into an (acc_rows, 128)
    VMEM partial per split. Masking only runs on tiles that can be partially
    invalid (ragged last tile / clamped duplicate tiles)."""

    folds = tile_rows // acc_rows

    def _accumulate(acc_ref, dd):
        acc_ref[...] += jnp.sum(dd.reshape(folds, acc_rows, LANES), axis=0)

    def kernel(sr_ref, hr_ref, o_ref, acc_ref):
        c = pl.program_id(0)   # core/split index
        j = pl.program_id(1)   # tile index within split (reduction axis)

        @pl.when(j == 0)
        def _():
            acc_ref[...] = jnp.zeros_like(acc_ref)

        d = sr_ref[...].astype(jnp.float32) - hr_ref[...].astype(jnp.float32)
        dd = d * d

        if needs_mask:
            tile_idx = c * tiles_per_split + j

            @pl.when(tile_idx < first_masked_tile)
            def _():
                # Hot path: interior tiles, no iota / compare / select.
                _accumulate(acc_ref, dd)

            @pl.when(tile_idx >= first_masked_tile)
            def _():
                # Ragged last tile and clamped duplicate tiles: mask rows past
                # the valid extent (unclamped tile_idx -> duplicates sum to 0).
                row_ids = jax.lax.broadcasted_iota(
                    jnp.int32, (tile_rows, LANES), 0)
                valid = (tile_idx * tile_rows + row_ids) < rows_valid
                _accumulate(acc_ref, jnp.where(valid, dd, 0.0))
        else:
            _accumulate(acc_ref, dd)

        @pl.when(j == tiles_per_split - 1)
        def _():
            o_ref[0] = acc_ref[...]

    return kernel


def psnr_pallas(sr, hr, pixel_max: float = 1.0):
    assert sr.shape == hr.shape, "sr and hr must have identical shapes"
    n = sr.size
    flat_sr = sr.reshape(-1)
    flat_hr = hr.reshape(-1)

    chunk = SUBLANES * LANES               # 1024 elements
    n_main = (n // chunk) * chunk          # kernel-processed prefix
    ssd = jnp.float32(0.0)

    if n_main > 0:
        rows_main = n_main // LANES        # multiple of 8
        sr2d = flat_sr[:n_main].reshape(rows_main, LANES)
        hr2d = flat_hr[:n_main].reshape(rows_main, LANES)

        tile_rows = _tile_rows_for(sr.dtype, rows_main)        # multiple of 8
        acc_rows = ACC_ROWS_WIDE if tile_rows % ACC_ROWS_WIDE == 0 else SUBLANES
        num_tiles = (rows_main + tile_rows - 1) // tile_rows
        last_tile = num_tiles - 1

        num_cores, use_core_parallel = _core_split()
        splits = max(1, min(num_cores, num_tiles))             # no wasted duplicate sweeps
        tiles_per_split = (num_tiles + splits - 1) // splits

        has_ragged_tile = (rows_main % tile_rows) != 0
        has_duplicates = splits * tiles_per_split != num_tiles
        needs_mask = has_ragged_tile or has_duplicates
        first_masked_tile = num_tiles - 1 if has_ragged_tile else num_tiles

        if splits > 1 and use_core_parallel and hasattr(pltpu, "CORE_PARALLEL"):
            dim_sems = (pltpu.CORE_PARALLEL, pltpu.ARBITRARY)
        else:
            dim_sems = ("parallel", "arbitrary")

        def in_map(c, j):
            # Clamp so the DMA always stays in-bounds; clamped duplicates are
            # fully masked inside the kernel (contribute exactly 0).
            return (jnp.minimum(c * tiles_per_split + j, last_tile), 0)

        partials = pl.pallas_call(
            _make_ssd_kernel(rows_main, tile_rows, tiles_per_split, acc_rows,
                             needs_mask, first_masked_tile),
            out_shape=jax.ShapeDtypeStruct((splits, acc_rows, LANES), jnp.float32),
            grid_spec=pltpu.PrefetchScalarGridSpec(
                num_scalar_prefetch=0,
                grid=(splits, tiles_per_split),
                in_specs=[
                    pl.BlockSpec((tile_rows, LANES), in_map),
                    pl.BlockSpec((tile_rows, LANES), in_map),
                ],
                out_specs=pl.BlockSpec((1, acc_rows, LANES), lambda c, j: (c, 0, 0)),
                scratch_shapes=[pltpu.VMEM((acc_rows, LANES), jnp.float32)],
            ),
            compiler_params=pltpu.CompilerParams(
                dimension_semantics=dim_sems,
                vmem_limit_bytes=VMEM_LIMIT_BYTES,
            ),
        )(sr2d, hr2d)
        ssd = ssd + jnp.sum(partials)

    if n_main < n:
        # <1024-element ragged tail: negligible, handled in plain jnp.
        dt = flat_sr[n_main:].astype(jnp.float32) - flat_hr[n_main:].astype(jnp.float32)
        ssd = ssd + jnp.sum(dt * dt)

    mse = ssd / jnp.float32(n)
    return 20.0 * jnp.log10(jnp.float32(pixel_max) / jnp.sqrt(mse))


def _psnr_ref(sr, hr, pixel_max=1.0):
    mse = jnp.mean((sr.astype(jnp.float32) - hr.astype(jnp.float32)) ** 2)
    return 20.0 * jnp.log10(jnp.float32(pixel_max) / jnp.sqrt(mse))


if __name__ == "__main__":
    key = jax.random.PRNGKey(0)
    k1, k2, k3, k4 = jax.random.split(key, 4)

    # Case 1: NCHW inputs, 1024-divisible element count (pure kernel path).
    sr1 = jax.random.uniform(k1, (2, 4, 16, 16), dtype=jnp.float32)
    hr1 = jax.random.uniform(k2, (2, 4, 16, 16), dtype=jnp.float32)
    out1 = jax.block_until_ready(psnr_pallas(sr1, hr1, pixel_max=1.0))
    ref1 = _psnr_ref(sr1, hr1, 1.0)
    assert jnp.allclose(out1, ref1, rtol=1e-5, atol=1e-4), (out1, ref1)

    # Case 2: non-1024-divisible element count (kernel prefix + jnp tail).
    sr2 = jax.random.uniform(k3, (2, 3, 16, 16), dtype=jnp.float32)
    hr2 = jax.random.uniform(k4, (2, 3, 16, 16), dtype=jnp.float32)
    out2 = jax.block_until_ready(psnr_pallas(sr2, hr2, pixel_max=1.0))
    ref2 = _psnr_ref(sr2, hr2, 1.0)
    assert jnp.allclose(out2, ref2, rtol=1e-5, atol=1e-4), (out2, ref2)

    print("KERNEL_OK")
</pallas_src>

<mosaic_0001>
module attributes {stable_mosaic.version = 11 : i64} {
  func.func @kernel(%arg0: i32, %arg1: i32, %arg2: memref<16x128xf32, #tpu.memory_space<vmem>>, %arg3: memref<16x128xf32, #tpu.memory_space<vmem>>, %arg4: memref<1x8x128xf32, #tpu.memory_space<vmem>>, %arg5: memref<8x128xf32, #tpu.memory_space<vmem>>) attributes {dimension_semantics = [#tpu.dimension_semantics<parallel>, #tpu.dimension_semantics<arbitrary>], iteration_bounds = array<i64: 1, 1>, scalar_prefetch = 0 : i64, scratch_operands = 1 : i64, tpu.core_type = #tpu.core_type<tc>, window_params = [{transform_indices = @transform_0, window_bounds = array<i64: 16, 128>}, {transform_indices = @transform_1, window_bounds = array<i64: 16, 128>}, {transform_indices = @transform_2, window_bounds = array<i64: 1, 8, 128>}]} {
    %c0_i32 = arith.constant 0 : i32
    %0 = arith.cmpi eq, %arg1, %c0_i32 : i32
    %1 = arith.extui %0 : i1 to i32
    %c0_i32_0 = arith.constant 0 : i32
    %2 = arith.cmpi ne, %1, %c0_i32_0 : i32
    scf.if %2 {
      %cst_10 = arith.constant 0.000000e+00 : f32
      %15 = vector.broadcast %cst_10 : f32 to vector<8x128xf32>
      %c0_11 = arith.constant 0 : index
      %c0_12 = arith.constant 0 : index
      %16 = vector.load %arg5[%c0_11, %c0_12] : memref<8x128xf32, #tpu.memory_space<vmem>>, vector<8x128xf32>
      tpu.vector_store %arg5[%c0_11, %c0_12], %15 {strides = array<i32>} : memref<8x128xf32, #tpu.memory_space<vmem>>, vector<8x128xf32>,
    } else {
    }
    %c0 = arith.constant 0 : index
    %c0_1 = arith.constant 0 : index
    %3 = vector.load %arg2[%c0, %c0_1] : memref<16x128xf32, #tpu.memory_space<vmem>>, vector<16x128xf32>
    %c0_2 = arith.constant 0 : index
    %c0_3 = arith.constant 0 : index
    %4 = vector.load %arg3[%c0_2, %c0_3] : memref<16x128xf32, #tpu.memory_space<vmem>>, vector<16x128xf32>
    %5 = arith.subf %3, %4 : vector<16x128xf32>
    %6 = arith.mulf %5, %5 : vector<16x128xf32>
    %c0_4 = arith.constant 0 : index
    %c0_5 = arith.constant 0 : index
    %7 = vector.load %arg5[%c0_4, %c0_5] : memref<8x128xf32, #tpu.memory_space<vmem>>, vector<8x128xf32>
    %8 = vector.shape_cast %6 : vector<16x128xf32> to vector<2x8x128xf32>
    %cst = arith.constant dense<0.000000e+00> : vector<8x128xf32>
    %9 = vector.multi_reduction <add>, %8, %cst [0] : vector<2x8x128xf32> to vector<8x128xf32>
    %10 = arith.addf %7, %9 : vector<8x128xf32>
    %c0_6 = arith.constant 0 : index
    %c0_7 = arith.constant 0 : index
    %11 = vector.load %arg5[%c0_6, %c0_7] : memref<8x128xf32, #tpu.memory_space<vmem>>, vector<8x128xf32>
    tpu.vector_store %arg5[%c0_6, %c0_7], %10 {strides = array<i32>} : memref<8x128xf32, #tpu.memory_space<vmem>>, vector<8x128xf32>,
    %c0_i32_8 = arith.constant 0 : i32
    %12 = arith.cmpi eq, %arg1, %c0_i32_8 : i32
    %13 = arith.extui %12 : i1 to i32
    %c0_i32_9 = arith.constant 0 : i32
    %14 = arith.cmpi ne, %13, %c0_i32_9 : i32
    scf.if %14 {
      %c0_10 = arith.constant 0 : index
      %c0_11 = arith.constant 0 : index
      %15 = vector.load %arg5[%c0_10, %c0_11] : memref<8x128xf32, #tpu.memory_space<vmem>>, vector<8x128xf32>
      %c0_12 = arith.constant 0 : index
      %c0_13 = arith.constant 0 : index
      %c0_14 = arith.constant 0 : index
      %16 = vector.load %arg4[%c0_12, %c0_13, %c0_14] : memref<1x8x128xf32, #tpu.memory_space<vmem>>, vector<1x8x128xf32>
      %17 = vector.shape_cast %16 : vector<1x8x128xf32> to vector<8x128xf32>
      %18 = vector.shape_cast %15 : vector<8x128xf32> to vector<1x8x128xf32>
      tpu.vector_store %arg4[%c0_12, %c0_13, %c0_14], %18 {strides = array<i32>} : memref<1x8x128xf32, #tpu.memory_space<vmem>>, vector<1x8x128xf32>,
    } else {
    }
    return
  }
  func.func @transform_0(%arg0: i32, %arg1: i32) -> (i32, i32) {
    %c1_i32 = arith.constant 1 : i32
    %0 = arith.muli %arg0, %c1_i32 : i32
    %1 = arith.addi %0, %arg1 : i32
    %c0_i32 = arith.constant 0 : i32
    %2 = arith.minsi %1, %c0_i32 : i32
    %c0_i32_0 = arith.constant 0 : i32
    %c0_i32_1 = arith.constant 0 : i32
    return %2, %c0_i32_0 : i32, i32
  }
  func.func @transform_1(%arg0: i32, %arg1: i32) -> (i32, i32) {
    %c1_i32 = arith.constant 1 : i32
    %0 = arith.muli %arg0, %c1_i32 : i32
    %1 = arith.addi %0, %arg1 : i32
    %c0_i32 = arith.constant 0 : i32
    %2 = arith.minsi %1, %c0_i32 : i32
    %c0_i32_0 = arith.constant 0 : i32
    %c0_i32_1 = arith.constant 0 : i32
    return %2, %c0_i32_0 : i32, i32
  }
  func.func @transform_2(%arg0: i32, %arg1: i32) -> (i32, i32, i32) {
    %c0_i32 = arith.constant 0 : i32
    %c0_i32_0 = arith.constant 0 : i32
    %c0_i32_1 = arith.constant 0 : i32
    return %arg0, %c0_i32, %c0_i32_0 : i32, i32, i32
  }
}

</mosaic_0001>

<llo_original>
// kernel: tpu_custom_call.1
$region0: #{tpu_custom_call.1}
  #allocation0 [shape = 'u32[]', space=smem, size = 0x4, offset = 0x4, fixed_abs, tag = 'smem constant byte address 0x4 - core index']
  #allocation1 [shape = 'u32[72,128]{1,0:T(1,128)}', space=vmem, size = 0x9000, scoped, tag = 'internal scratch']
  #allocation2 [shape = 'f32[8,128]{1,0:T(8,128)}', space=vmem, size = 0x1000, scoped, tag = 'scratch operand']
  %s0 = inlined_call_operand.hbm [shape: f32[16,128], index: 0, kind: input, shape index: {}]
  %s1 = inlined_call_operand.hbm [shape: f32[16,128], index: 1, kind: input, shape index: {}]
  %s2 = inlined_call_operand.hbm [shape: f32[1,8,128], index: 2, kind: output, shape index: {}]
  %s3 = sld [smem:[#allocation0]]
  $region34: #{tpu_custom_call.1} parent=0
    _
  %s5 = ssub.s32 1, %s3
  %s6 = scalar_select 0, %s5, %s3
  $region1: #{tpu_custom_call.1} parent=0
    #allocation3 [shape = 'u8[8192]{0}', space=vmem, size = 0x2000, scoped, tag = 'input window, operand 0, single buffered']
    #allocation4 [shape = 's32[1]{0}', space=sflag, size = 0x4, scoped, tag = 'scoped memory for tpu_custom_call.1']
    #allocation5 [shape = 's32[1]{0}', space=sflag, size = 0x4, scoped, tag = 'scoped memory for tpu_custom_call.1']
    #allocation6 [shape = 'u8[8192]{0}', space=vmem, size = 0x2000, scoped, tag = 'input window, operand 1, single buffered']
    #allocation7 [shape = 's32[1]{0}', space=sflag, size = 0x4, scoped, tag = 'scoped memory for tpu_custom_call.1']
    #allocation8 [shape = 'u8[4096]{0}', space=vmem, size = 0x1000, scoped, tag = 'output window, operand 0, single buffered']
    %7 = vsyncpa [#allocation4], 0
    %8 = vsyncpa [#allocation7], 0
    %9 = vsyncpa [#allocation5], 0
    // Predicated region
    $region2: #{tpu_custom_call.1} parent=1 // pred_check
      _
    $region3: #{tpu_custom_call.1} parent=1 // pred_check_branch
      %11 = sbr.rel (0) target = $region5
    $region4: #{tpu_custom_call.1} parent=1 // pred_region
      %s12 = sadd.s32 0, 0
      %p13 = scmp.lt.s32.totalorder %s12, 0
      %s14 = scalar_select %p13, %s12, 0
      %s15 = smul.u32 2, %s14
      %17 = vsyncadd [#allocation4], 0
      %s18 = smul.addr %s15, 8
      %s19 = scalar_lea.hbm %s0, %s18
      %s20 = sshll.u32 %s19, 4
      %s21 = int_to_ptr.hbm [resolvable:$true] %s20
      %s22 = sshll.u32 [#allocation3], 4
      %s23 = int_to_ptr.vmem [resolvable:$true] %s22
      %28 = dma.hbm_to_vmem [thread:$0]  %s21, 256, %s23, [#allocation4], 128, 128, 8
    $region5: #{tpu_custom_call.1} parent=1 // pred_fallthru
      _
    // Predicated region
    $region6: #{tpu_custom_call.1} parent=1 // pred_check
      _
    $region7: #{tpu_custom_call.1} parent=1 // pred_check_branch
      %30 = sbr.rel (0) target = $region9
    $region8: #{tpu_custom_call.1} parent=1 // pred_region
      %s31 = sadd.s32 0, 0
      %p32 = scmp.lt.s32.totalorder %s31, 0
      %s33 = scalar_select %p32, %s31, 0
      %s34 = smul.u32 2, %s33
      %36 = vsyncadd [#allocation7], 0
      %s37 = smul.addr %s34, 8
      %s38 = scalar_lea.hbm %s1, %s37
      %s39 = sshll.u32 %s38, 4
      %s40 = int_to_ptr.hbm [resolvable:$true] %s39
      %s41 = sshll.u32 [#allocation6], 4
      %s42 = int_to_ptr.vmem [resolvable:$true] %s41
      %47 = dma.hbm_to_vmem [thread:$0]  %s40, 256, %s42, [#allocation7], 128, 128, 8
    $region9: #{tpu_custom_call.1} parent=1 // pred_fallthru
      _
    // Predicated region
    $region10: #{tpu_custom_call.1} parent=1 // pred_check
      _
    $region11: #{tpu_custom_call.1} parent=1 // pred_check_branch
      %49 = sbr.rel (0) target = $region13
    $region12: #{tpu_custom_call.1} parent=1 // pred_region
      %51 = dma.done [#allocation4], 256
    $region13: #{tpu_custom_call.1} parent=1 // pred_fallthru
      _
    // Predicated region
    $region14: #{tpu_custom_call.1} parent=1 // pred_check
      _
    $region15: #{tpu_custom_call.1} parent=1 // pred_check_branch
      %53 = sbr.rel (0) target = $region17
    $region16: #{tpu_custom_call.1} parent=1 // pred_region
      %55 = dma.done [#allocation7], 256
    $region17: #{tpu_custom_call.1} parent=1 // pred_fallthru
      _
    %s56 = sadd.s32 0, 0
    %p57 = scmp.lt.s32.totalorder %s56, 0
    %s58 = scalar_select %p57, %s56, 0
    %s59 = smul.u32 2, %s58
    %s60 = sadd.s32 0, 0
    %p61 = scmp.lt.s32.totalorder %s60, 0
    %s62 = scalar_select %p61, %s60, 0
    %s63 = smul.u32 2, %s62
    %p64 = scmp.eq.s32.totalorder 0, 0
    // Predicated region
    $region18: #{tpu_custom_call.1} parent=1 // pred_check
      %p65 = pneg %p64
    $region19: #{tpu_custom_call.1} parent=1 // pred_check_branch
      %67 = sbr.rel (%p65) target = $region21
    $region20: #{tpu_custom_call.1} parent=1 // pred_region
      %68 = vst [vmem:[#allocation2] sm:$0xff] 0.0
    $region21: #{tpu_custom_call.1} parent=1 // pred_fallthru
      _
    %v69 = vld [vmem:[#allocation3] sm:$0xff]
    %v70 = vld [vmem:[#allocation3 + $0x8] sm:$0xff]
    %v71 = vld [vmem:[#allocation6] sm:$0xff]
    %v72 = vld [vmem:[#allocation6 + $0x8] sm:$0xff]
    %v73 = vsub.f32 %v69, %v71
    %v74 = vsub.f32 %v70, %v72
    %v75 = vmul.f32 %v73, %v73
    %v76 = vmul.f32 %v74, %v74
    %v77 = vld [vmem:[#allocation2] sm:$0xff]
    %v78 = vadd.f32 %v75, %v76
    %v79 = vadd.f32 %v77, %v78
    %80 = vst [vmem:[#allocation2] sm:$0xff] %v79
    // Predicated region
    $region22: #{tpu_custom_call.1} parent=1 // pred_check
      %p81 = pneg %p64
    $region23: #{tpu_custom_call.1} parent=1 // pred_check_branch
      %83 = sbr.rel (%p81) target = $region25
    $region24: #{tpu_custom_call.1} parent=1 // pred_region
      %v84 = vld [vmem:[#allocation2] sm:$0xff]
      %85 = vst [vmem:[#allocation8] sm:$0xff] %v84
    $region25: #{tpu_custom_call.1} parent=1 // pred_fallthru
      _
    // Predicated region
    $region26: #{tpu_custom_call.1} parent=1 // pred_check
      _
    $region27: #{tpu_custom_call.1} parent=1 // pred_check_branch
      %87 = sbr.rel (0) target = $region29
    $region28: #{tpu_custom_call.1} parent=1 // pred_region
      %89 = vsyncadd [#allocation5], 0
      %s91 = sshll.u32 [#allocation8], 4
      %s92 = int_to_ptr.vmem [resolvable:$true] %s91
      %s93 = sshll.u32 %s2, 4
      %s94 = int_to_ptr.hbm [resolvable:$true] %s93
      %96 = dma.vmem_to_hbm [thread:$0]  %s92, 128, %s94, [#allocation5]
    $region29: #{tpu_custom_call.1} parent=1 // pred_fallthru
      _
    // Predicated region
    $region30: #{tpu_custom_call.1} parent=1 // pred_check
      _
    $region31: #{tpu_custom_call.1} parent=1 // pred_check_branch
      %98 = sbr.rel (0) target = $region33
    $region32: #{tpu_custom_call.1} parent=1 // pred_region
      %100 = dma.done [#allocation5], 128
    $region33: #{tpu_custom_call.1} parent=1 // pred_fallthru
      _
    %101 = vsyncpa [#allocation4], 1
    %102 = vsyncpa [#allocation7], 1
    %103 = vsyncpa [#allocation5], 1

</llo_original>
